<compile_context>
chip_gen: v6e
topology: v6e:2x2x1
jax: 0.10.0
libtpu: 0.0.40
codegen_flags: <defaults>
</compile_context>

<pallas_src>
import functools

import jax
import jax.numpy as jnp
from jax.experimental import pallas as pl
from jax.experimental.pallas import tpu as pltpu


# Stay well under v7x's 64 MiB physical VMEM while raising the 16/32 MiB
# default scoped limits on v5e/v6e.
_VMEM_LIMIT_CAP = 56 * 1024 * 1024
# Above this estimated resident footprint, switch to the row-tiled passes.
_FUSED_VMEM_BUDGET = 24 * 1024 * 1024


# ---------------------------------------------------------------------------
# Fused single-call kernel (whole graph resident in VMEM).
# ---------------------------------------------------------------------------
def _gaec_fused_kernel(x_ref, adj_ref, w1_ref, w2_ref, w3_ref,
                       wc1_ref, bc1_ref, wc2_ref, bc2_ref,
                       z_ref, c_ref):
    x = x_ref[...]
    adj = adj_ref[...]

    # GNN layer 1 (active=True): support = tanh(x @ W1); z1 = adj @ support
    s1 = jnp.tanh(jnp.dot(x, w1_ref[...], preferred_element_type=jnp.float32))
    z1 = jnp.dot(adj, s1, preferred_element_type=jnp.float32)

    # GNN layer 2 (active=True)
    s2 = jnp.tanh(jnp.dot(z1, w2_ref[...], preferred_element_type=jnp.float32))
    z2 = jnp.dot(adj, s2, preferred_element_type=jnp.float32)

    # GNN layer 3 (active=False: no tanh)
    s3 = jnp.dot(z2, w3_ref[...], preferred_element_type=jnp.float32)
    z_igae = jnp.dot(adj, s3, preferred_element_type=jnp.float32)
    z_ref[...] = z_igae

    # Cluster head: Linear -> ReLU -> Linear -> Softmax(dim=1)
    h = jnp.dot(z_igae, wc1_ref[...], preferred_element_type=jnp.float32) + bc1_ref[...]
    h = jnp.maximum(h, 0.0)
    logits = jnp.dot(h, wc2_ref[...], preferred_element_type=jnp.float32) + bc2_ref[...]
    m = jnp.max(logits, axis=-1, keepdims=True)
    e = jnp.exp(logits - m)
    # divide -> EUP reciprocal + VPU multiply (keeps the VALU slot free)
    c_ref[...] = e * pl.reciprocal(jnp.sum(e, axis=-1, keepdims=True))


# ---------------------------------------------------------------------------
# Row-tiled multi-pass kernels (grid over node-row tiles, "parallel").
# Each pass computes a row block of the NEXT layer's support so that every
# adjacency application is a single row-tiled sweep over adj.
# ---------------------------------------------------------------------------
def _support1_kernel(x_ref, w1_ref, s1_ref):
    # s1 = tanh(x @ W1)          (purely row-local)
    s1_ref[...] = jnp.tanh(jnp.dot(x_ref[...], w1_ref[...],
                                   preferred_element_type=jnp.float32))


def _agg_then_support_kernel(adj_ref, s_prev_ref, w_ref, s_out_ref, *, activate):
    # z_blk  = adj[rows, :] @ s_prev           (row block of adj @ support)
    # s_out  = act(z_blk @ W)                  (next layer's support rows)
    z = jnp.dot(adj_ref[...], s_prev_ref[...], preferred_element_type=jnp.float32)
    s = jnp.dot(z, w_ref[...], preferred_element_type=jnp.float32)
    if activate:
        s = jnp.tanh(s)
    s_out_ref[...] = s


def _agg_then_head_kernel(adj_ref, s3_ref, wc1_ref, bc1_ref, wc2_ref, bc2_ref,
                          z_ref, c_ref):
    # z_igae rows + cluster head (Linear -> ReLU -> Linear -> Softmax)
    z = jnp.dot(adj_ref[...], s3_ref[...], preferred_element_type=jnp.float32)
    z_ref[...] = z
    h = jnp.dot(z, wc1_ref[...], preferred_element_type=jnp.float32) + bc1_ref[...]
    h = jnp.maximum(h, 0.0)
    logits = jnp.dot(h, wc2_ref[...], preferred_element_type=jnp.float32) + bc2_ref[...]
    m = jnp.max(logits, axis=-1, keepdims=True)
    e = jnp.exp(logits - m)
    c_ref[...] = e * pl.reciprocal(jnp.sum(e, axis=-1, keepdims=True))


# ---------------------------------------------------------------------------
# Wrappers
# ---------------------------------------------------------------------------
def _row_spec(tm, d):
    return pl.BlockSpec((tm, d), lambda i: (i, 0))


def _resident_spec(shape):
    # Full array, constant index_map -> stays resident across grid steps.
    return pl.BlockSpec(shape, lambda i, _s=shape: tuple(0 for _ in _s))


def _fused_vmem_bytes(N, n_input, enc1, enc2, enc3, n_clusters):
    acts = N * (n_input + N + 2 * enc1 + 2 * enc2 + 3 * enc3 + n_clusters)
    weights = (n_input * enc1 + enc1 * enc2 + enc2 * enc3
               + enc3 * enc3 + enc3 + enc3 * n_clusters + n_clusters)
    return 4 * (acts + weights)


def _gaec_forward_fused(x, adj, params, dims):
    N, n_input, enc1, enc2, enc3, n_clusters = dims
    weights_elems = (n_input * enc1 + enc1 * enc2 + enc2 * enc3
                     + enc3 * enc3 + enc3 + enc3 * n_clusters + n_clusters)
    flops = 2 * (N * n_input * enc1 + N * N * enc1 + N * enc1 * enc2
                 + N * N * enc2 + N * enc2 * enc3 + N * N * enc3
                 + N * enc3 * enc3 + N * enc3 * n_clusters)
    transc = N * (enc1 + enc2 + n_clusters)
    bytes_accessed = 4 * (N * n_input + N * N + weights_elems
                          + N * enc3 + N * n_clusters)

    est = _fused_vmem_bytes(*dims)
    vmem_limit = int(min(_VMEM_LIMIT_CAP, max(32 * 1024 * 1024, 4 * est)))

    vmem = pl.BlockSpec(memory_space=pltpu.VMEM)
    out_shapes = (jax.ShapeDtypeStruct((N, enc3), jnp.float32),
                  jax.ShapeDtypeStruct((N, n_clusters), jnp.float32))
    return pl.pallas_call(
        _gaec_fused_kernel,
        out_shape=out_shapes,
        in_specs=[vmem] * 9,
        out_specs=(vmem, vmem),
        compiler_params=pltpu.CompilerParams(vmem_limit_bytes=vmem_limit),
        cost_estimate=pl.CostEstimate(flops=flops, transcendentals=transc,
                                      bytes_accessed=bytes_accessed),
    )(x, adj,
      params["w1"], params["w2"], params["w3"],
      params["wc1"], params["bc1"], params["wc2"], params["bc2"])


def _gaec_forward_tiled(x, adj, params, dims, row_tile):
    N, n_input, enc1, enc2, enc3, n_clusters = dims
    tm = min(row_tile, N)
    if tm < N:
        tm = max(8, (tm // 8) * 8)          # keep the sublane dim 8-aligned
    grid = (pl.cdiv(N, tm),)
    cparams = pltpu.CompilerParams(
        dimension_semantics=("parallel",),   # shards row tiles across v7x TCs
        vmem_limit_bytes=_VMEM_LIMIT_CAP)

    # Pass 1: s1 = tanh(x @ W1)
    s1 = pl.pallas_call(
        _support1_kernel,
        out_shape=jax.ShapeDtypeStruct((N, enc1), jnp.float32),
        grid=grid,
        in_specs=[_row_spec(tm, n_input), _resident_spec((n_input, enc1))],
        out_specs=_row_spec(tm, enc1),
        compiler_params=cparams,
        cost_estimate=pl.CostEstimate(
            flops=2 * N * n_input * enc1, transcendentals=N * enc1,
            bytes_accessed=4 * (N * n_input + n_input * enc1 + N * enc1)),
    )(x, params["w1"])

    # Pass 2: s2 = tanh((adj @ s1) @ W2)
    s2 = pl.pallas_call(
        functools.partial(_agg_then_support_kernel, activate=True),
        out_shape=jax.ShapeDtypeStruct((N, enc2), jnp.float32),
        grid=grid,
        in_specs=[_row_spec(tm, N), _resident_spec((N, enc1)),
                  _resident_spec((enc1, enc2))],
        out_specs=_row_spec(tm, enc2),
        compiler_params=cparams,
        cost_estimate=pl.CostEstimate(
            flops=2 * (N * N * enc1 + N * enc1 * enc2), transcendentals=N * enc2,
            bytes_accessed=4 * (N * N + N * enc1 + enc1 * enc2 + N * enc2)),
    )(adj, s1, params["w2"])

    # Pass 3: s3 = (adj @ s2) @ W3   (gnn_3 is active=False -> no tanh)
    s3 = pl.pallas_call(
        functools.partial(_agg_then_support_kernel, activate=False),
        out_shape=jax.ShapeDtypeStruct((N, enc3), jnp.float32),
        grid=grid,
        in_specs=[_row_spec(tm, N), _resident_spec((N, enc2)),
                  _resident_spec((enc2, enc3))],
        out_specs=_row_spec(tm, enc3),
        compiler_params=cparams,
        cost_estimate=pl.CostEstimate(
            flops=2 * (N * N * enc2 + N * enc2 * enc3), transcendentals=0,
            bytes_accessed=4 * (N * N + N * enc2 + enc2 * enc3 + N * enc3)),
    )(adj, s2, params["w3"])

    # Pass 4: z_igae = adj @ s3 ; cluster head on the same row block
    z_igae, c = pl.pallas_call(
        _agg_then_head_kernel,
        out_shape=(jax.ShapeDtypeStruct((N, enc3), jnp.float32),
                   jax.ShapeDtypeStruct((N, n_clusters), jnp.float32)),
        grid=grid,
        in_specs=[_row_spec(tm, N), _resident_spec((N, enc3)),
                  _resident_spec((enc3, enc3)), _resident_spec((1, enc3)),
                  _resident_spec((enc3, n_clusters)),
                  _resident_spec((1, n_clusters))],
        out_specs=(_row_spec(tm, enc3), _row_spec(tm, n_clusters)),
        compiler_params=cparams,
        cost_estimate=pl.CostEstimate(
            flops=2 * (N * N * enc3 + N * enc3 * enc3 + N * enc3 * n_clusters),
            transcendentals=N * n_clusters,
            bytes_accessed=4 * (N * N + 2 * N * enc3 + enc3 * (enc3 + n_clusters)
                                + enc3 + n_clusters + N * n_clusters)),
    )(adj, s3, params["wc1"], params["bc1"], params["wc2"], params["bc2"])
    return z_igae, c


def gaec_forward(x, adj, params, *, row_tile=256, force_tiled=False):
    """Fused GAEC forward.  Single graph (x: (N, n_input), adj: (N, N)).

    Small graphs run as one fused VMEM-resident call; larger graphs (or
    force_tiled=True) use four row-tiled, "parallel"-grid passes so adj is
    streamed in (tm, N) blocks and both v7x TensorCores are used.
    """
    N, n_input = x.shape
    enc1 = params["w1"].shape[1]
    enc2 = params["w2"].shape[1]
    enc3 = params["w3"].shape[1]
    n_clusters = params["wc2"].shape[1]
    dims = (N, n_input, enc1, enc2, enc3, n_clusters)

    if (not force_tiled) and 2 * _fused_vmem_bytes(*dims) <= _FUSED_VMEM_BUDGET:
        return _gaec_forward_fused(x, adj, params, dims)
    return _gaec_forward_tiled(x, adj, params, dims, row_tile)


# ---------------------------------------------------------------------------
# Parameter init (matches PyTorch layouts: GNN weights xavier-uniform, kept
# as (in, out) so the kernel computes features @ W; linear layers torch-style).
# ---------------------------------------------------------------------------
def xavier_uniform(key, fan_in, fan_out):
    limit = (6.0 / (fan_in + fan_out)) ** 0.5
    return jax.random.uniform(key, (fan_in, fan_out), jnp.float32, -limit, limit)


def init_params(key, n_input, enc1, enc2, enc3, n_clusters):
    ks = jax.random.split(key, 8)
    bound = 1.0 / enc3 ** 0.5
    return {
        "w1": xavier_uniform(ks[0], n_input, enc1),
        "w2": xavier_uniform(ks[1], enc1, enc2),
        "w3": xavier_uniform(ks[2], enc2, enc3),
        "wc1": jax.random.uniform(ks[3], (enc3, enc3), jnp.float32, -bound, bound),
        "bc1": jax.random.uniform(ks[4], (1, enc3), jnp.float32, -bound, bound),
        "wc2": jax.random.uniform(ks[5], (enc3, n_clusters), jnp.float32, -bound, bound),
        "bc2": jax.random.uniform(ks[6], (1, n_clusters), jnp.float32, -bound, bound),
    }


def reference_forward(x, adj, p):
    """Pure-JAX reference of the same math (sanity check)."""
    z1 = adj @ jnp.tanh(x @ p["w1"])
    z2 = adj @ jnp.tanh(z1 @ p["w2"])
    z_igae = adj @ (z2 @ p["w3"])
    h = jnp.maximum(z_igae @ p["wc1"] + p["bc1"], 0.0)
    logits = h @ p["wc2"] + p["bc2"]
    c = jax.nn.softmax(logits, axis=1)
    return z_igae, c


if __name__ == "__main__":
    # Small shapes: N=16 nodes, n_input=32, enc dims 32/32/16, 4 clusters.
    N, n_input, enc1, enc2, enc3, n_clusters = 16, 32, 32, 32, 16, 4

    key = jax.random.PRNGKey(0)
    kx, kadj, kp = jax.random.split(key, 3)

    x = jax.random.normal(kx, (N, n_input), jnp.float32)
    a = jax.random.uniform(kadj, (N, N), jnp.float32)
    adj = (a + a.T) * 0.5 + jnp.eye(N, dtype=jnp.float32)
    adj = adj / jnp.sum(adj, axis=1, keepdims=True)

    params = init_params(kp, n_input, enc1, enc2, enc3, n_clusters)
    z_ref, c_ref = reference_forward(x, adj, params)

    # Path 1: fused single-call kernel (small-graph regime).
    z_fused, c_fused = gaec_forward(x, adj, params)
    jax.block_until_ready((z_fused, c_fused))

    # Path 2: row-tiled "parallel"-grid passes (large-N / dual-TC path), forced.
    z_tiled, c_tiled = gaec_forward(x, adj, params, force_tiled=True, row_tile=8)
    jax.block_until_ready((z_tiled, c_tiled))

    for z_k, c_k in ((z_fused, c_fused), (z_tiled, c_tiled)):
        assert z_k.shape == (N, enc3) and c_k.shape == (N, n_clusters)
        assert jnp.allclose(z_k, z_ref, atol=1e-4, rtol=1e-4)
        assert jnp.allclose(c_k, c_ref, atol=1e-4, rtol=1e-4)
        assert jnp.allclose(jnp.sum(c_k, axis=1), 1.0, atol=1e-5)

    print("KERNEL_OK")
</pallas_src>

<mosaic_0001>
module attributes {stable_mosaic.version = 11 : i64} {
  func.func @_gaec_fused_kernel(%arg0: memref<16x32xf32, #tpu.memory_space<vmem>>, %arg1: memref<16x16xf32, #tpu.memory_space<vmem>>, %arg2: memref<32x32xf32, #tpu.memory_space<vmem>>, %arg3: memref<32x32xf32, #tpu.memory_space<vmem>>, %arg4: memref<32x16xf32, #tpu.memory_space<vmem>>, %arg5: memref<16x16xf32, #tpu.memory_space<vmem>>, %arg6: memref<1x16xf32, #tpu.memory_space<vmem>>, %arg7: memref<16x4xf32, #tpu.memory_space<vmem>>, %arg8: memref<1x4xf32, #tpu.memory_space<vmem>>, %arg9: memref<16x16xf32, #tpu.memory_space<vmem>>, %arg10: memref<16x4xf32, #tpu.memory_space<vmem>>) attributes {dimension_semantics = [], scalar_prefetch = 0 : i64, scratch_operands = 0 : i64, tpu.core_type = #tpu.core_type<tc>} {
    %c0 = arith.constant 0 : index
    %c0_0 = arith.constant 0 : index
    %0 = vector.load %arg0[%c0, %c0_0] : memref<16x32xf32, #tpu.memory_space<vmem>>, vector<16x32xf32>
    %c0_1 = arith.constant 0 : index
    %c0_2 = arith.constant 0 : index
    %1 = vector.load %arg1[%c0_1, %c0_2] : memref<16x16xf32, #tpu.memory_space<vmem>>, vector<16x16xf32>
    %c0_3 = arith.constant 0 : index
    %c0_4 = arith.constant 0 : index
    %2 = vector.load %arg2[%c0_3, %c0_4] : memref<32x32xf32, #tpu.memory_space<vmem>>, vector<32x32xf32>
    %cst = arith.constant dense<0.000000e+00> : vector<16x32xf32>
    %3 = tpu.matmul %0, %2, %cst {dimension_numbers = #tpu.dot_dimension_numbers<[1], [0], [0], [1], [0, 0, 1, 1], [], []>} : vector<16x32xf32>, vector<32x32xf32>, vector<16x32xf32> -> vector<16x32xf32>
    %4 = math.tanh %3 : vector<16x32xf32>
    %cst_5 = arith.constant dense<0.000000e+00> : vector<16x32xf32>
    %5 = tpu.matmul %1, %4, %cst_5 {dimension_numbers = #tpu.dot_dimension_numbers<[1], [0], [0], [1], [0, 0, 1, 1], [], []>} : vector<16x16xf32>, vector<16x32xf32>, vector<16x32xf32> -> vector<16x32xf32>
    %c0_6 = arith.constant 0 : index
    %c0_7 = arith.constant 0 : index
    %6 = vector.load %arg3[%c0_6, %c0_7] : memref<32x32xf32, #tpu.memory_space<vmem>>, vector<32x32xf32>
    %cst_8 = arith.constant dense<0.000000e+00> : vector<16x32xf32>
    %7 = tpu.matmul %5, %6, %cst_8 {dimension_numbers = #tpu.dot_dimension_numbers<[1], [0], [0], [1], [0, 0, 1, 1], [], []>} : vector<16x32xf32>, vector<32x32xf32>, vector<16x32xf32> -> vector<16x32xf32>
    %8 = math.tanh %7 : vector<16x32xf32>
    %cst_9 = arith.constant dense<0.000000e+00> : vector<16x32xf32>
    %9 = tpu.matmul %1, %8, %cst_9 {dimension_numbers = #tpu.dot_dimension_numbers<[1], [0], [0], [1], [0, 0, 1, 1], [], []>} : vector<16x16xf32>, vector<16x32xf32>, vector<16x32xf32> -> vector<16x32xf32>
    %c0_10 = arith.constant 0 : index
    %c0_11 = arith.constant 0 : index
    %10 = vector.load %arg4[%c0_10, %c0_11] : memref<32x16xf32, #tpu.memory_space<vmem>>, vector<32x16xf32>
    %cst_12 = arith.constant dense<0.000000e+00> : vector<16x16xf32>
    %11 = tpu.matmul %9, %10, %cst_12 {dimension_numbers = #tpu.dot_dimension_numbers<[1], [0], [0], [1], [0, 0, 1, 1], [], []>} : vector<16x32xf32>, vector<32x16xf32>, vector<16x16xf32> -> vector<16x16xf32>
    %cst_13 = arith.constant dense<0.000000e+00> : vector<16x16xf32>
    %12 = tpu.matmul %1, %11, %cst_13 {dimension_numbers = #tpu.dot_dimension_numbers<[1], [0], [0], [1], [0, 0, 1, 1], [], []>} : vector<16x16xf32>, vector<16x16xf32>, vector<16x16xf32> -> vector<16x16xf32>
    %c0_14 = arith.constant 0 : index
    %c0_15 = arith.constant 0 : index
    %13 = vector.load %arg9[%c0_14, %c0_15] : memref<16x16xf32, #tpu.memory_space<vmem>>, vector<16x16xf32>
    tpu.vector_store %arg9[%c0_14, %c0_15], %12 {strides = array<i32>} : memref<16x16xf32, #tpu.memory_space<vmem>>, vector<16x16xf32>,
    %c0_16 = arith.constant 0 : index
    %c0_17 = arith.constant 0 : index
    %14 = vector.load %arg5[%c0_16, %c0_17] : memref<16x16xf32, #tpu.memory_space<vmem>>, vector<16x16xf32>
    %cst_18 = arith.constant dense<0.000000e+00> : vector<16x16xf32>
    %15 = tpu.matmul %12, %14, %cst_18 {dimension_numbers = #tpu.dot_dimension_numbers<[1], [0], [0], [1], [0, 0, 1, 1], [], []>} : vector<16x16xf32>, vector<16x16xf32>, vector<16x16xf32> -> vector<16x16xf32>
    %c0_19 = arith.constant 0 : index
    %c0_20 = arith.constant 0 : index
    %16 = vector.load %arg6[%c0_19, %c0_20] : memref<1x16xf32, #tpu.memory_space<vmem>>, vector<1x16xf32>
    %17 = vector.broadcast %16 : vector<1x16xf32> to vector<16x16xf32>
    %18 = arith.addf %15, %17 : vector<16x16xf32>
    %cst_21 = arith.constant 0.000000e+00 : f32
    %19 = vector.broadcast %cst_21 : f32 to vector<16x16xf32>
    %20 = arith.maximumf %18, %19 : vector<16x16xf32>
    %c0_22 = arith.constant 0 : index
    %c0_23 = arith.constant 0 : index
    %21 = vector.load %arg7[%c0_22, %c0_23] : memref<16x4xf32, #tpu.memory_space<vmem>>, vector<16x4xf32>
    %cst_24 = arith.constant dense<0.000000e+00> : vector<16x4xf32>
    %22 = tpu.matmul %20, %21, %cst_24 {dimension_numbers = #tpu.dot_dimension_numbers<[1], [0], [0], [1], [0, 0, 1, 1], [], []>} : vector<16x16xf32>, vector<16x4xf32>, vector<16x4xf32> -> vector<16x4xf32>
    %c0_25 = arith.constant 0 : index
    %c0_26 = arith.constant 0 : index
    %23 = vector.load %arg8[%c0_25, %c0_26] : memref<1x4xf32, #tpu.memory_space<vmem>>, vector<1x4xf32>
    %24 = vector.broadcast %23 : vector<1x4xf32> to vector<16x4xf32>
    %25 = arith.addf %22, %24 : vector<16x4xf32>
    %cst_27 = arith.constant dense<0xFF800000> : vector<16xf32>
    %26 = vector.multi_reduction <maximumf>, %25, %cst_27 [1] : vector<16x4xf32> to vector<16xf32>
    %27 = vector.shape_cast %26 : vector<16xf32> to vector<16x1xf32>
    %28 = vector.broadcast %27 : vector<16x1xf32> to vector<16x4xf32>
    %29 = arith.subf %25, %28 : vector<16x4xf32>
    %30 = math.exp %29 : vector<16x4xf32>
    %cst_28 = arith.constant dense<0.000000e+00> : vector<16xf32>
    %31 = vector.multi_reduction <add>, %30, %cst_28 [1] : vector<16x4xf32> to vector<16xf32>
    %32 = vector.shape_cast %31 : vector<16xf32> to vector<16x1xf32>
    %33 = tpu.reciprocal %32 : vector<16x1xf32> -> vector<16x1xf32>
    %34 = vector.broadcast %33 : vector<16x1xf32> to vector<16x4xf32>
    %35 = arith.mulf %30, %34 : vector<16x4xf32>
    %c0_29 = arith.constant 0 : index
    %c0_30 = arith.constant 0 : index
    %36 = vector.load %arg10[%c0_29, %c0_30] : memref<16x4xf32, #tpu.memory_space<vmem>>, vector<16x4xf32>
    tpu.vector_store %arg10[%c0_29, %c0_30], %35 {strides = array<i32>} : memref<16x4xf32, #tpu.memory_space<vmem>>, vector<16x4xf32>,
    return
  }
}

</mosaic_0001>

<llo_original>
// kernel: tpu_custom_call.1
$region0: #{tpu_custom_call.1}
  #allocation0 [shape = 'u32[]', space=smem, size = 0x4, offset = 0x4, fixed_abs, tag = 'smem constant byte address 0x4 - core index']
  #allocation1 [shape = 'u32[144,128]{1,0:T(1,128)}', space=vmem, size = 0x12000, scoped, tag = 'internal scratch']
  %s0 = inlined_call_operand.hbm [shape: f32[16,32], index: 0, kind: input, shape index: {}]
  %s1 = inlined_call_operand.hbm [shape: f32[16,16], index: 1, kind: input, shape index: {}]
  %s2 = inlined_call_operand.vmem [shape: f32[32,32], index: 2, kind: input, shape index: {}]
  %s3 = inlined_call_operand.vmem [shape: f32[32,32], index: 3, kind: input, shape index: {}]
  %s4 = inlined_call_operand.vmem [shape: f32[32,16], index: 4, kind: input, shape index: {}]
  %s5 = inlined_call_operand.hbm [shape: f32[16,16], index: 5, kind: input, shape index: {}]
  %s6 = inlined_call_operand.vmem [shape: f32[1,16], index: 6, kind: input, shape index: {}]
  %s7 = inlined_call_operand.vmem [shape: f32[16,4], index: 7, kind: input, shape index: {}]
  %s8 = inlined_call_operand.vmem [shape: f32[1,4], index: 8, kind: input, shape index: {}]
  %s9 = inlined_call_operand.hbm [shape: f32[16,16], index: 9, kind: output, shape index: {0}]
  %s10 = inlined_call_operand.vmem [shape: f32[16,4], index: 10, kind: output, shape index: {1}]
  %11 = xla_tuple %s9, %s10
  %s12 = sld [smem:[#allocation0]]
  $region66: #{tpu_custom_call.1} parent=0
    _
  %s14 = ssub.s32 1, %s12
  %s15 = scalar_select 0, %s14, %s12
  $region1: #{tpu_custom_call.1} parent=0
    #allocation2 [shape = 'u8[8192]{0}', space=vmem, size = 0x2000, scoped, tag = 'input window, operand 0, single buffered']
    #allocation3 [shape = 's32[1]{0}', space=sflag, size = 0x4, scoped, tag = 'scoped memory for tpu_custom_call.1']
    #allocation4 [shape = 's32[1]{0}', space=sflag, size = 0x4, scoped, tag = 'scoped memory for tpu_custom_call.1']
    #allocation5 [shape = 'u8[8192]{0}', space=vmem, size = 0x2000, scoped, tag = 'input window, operand 1, single buffered']
    #allocation6 [shape = 's32[1]{0}', space=sflag, size = 0x4, scoped, tag = 'scoped memory for tpu_custom_call.1']
    #allocation7 [shape = 'u8[8192]{0}', space=vmem, size = 0x2000, scoped, tag = 'input window, operand 5, single buffered']
    #allocation8 [shape = 'u8[8192]{0}', space=vmem, size = 0x2000, scoped, tag = 'output window, operand 0, single buffered']
    %16 = vsyncpa [#allocation3], 0
    %17 = vsyncpa [#allocation6], 0
    %18 = vsyncpa [#allocation4], 0
    // Predicated region
    $region2: #{tpu_custom_call.1} parent=1 // pred_check
      _
    $region3: #{tpu_custom_call.1} parent=1 // pred_check_branch
      %20 = sbr.rel (0) target = $region5
    $region4: #{tpu_custom_call.1} parent=1 // pred_region
      %s22 = ssub.s32 256, 256
      %23 = vsyncadd [#allocation3], %s22
      %s24 = sshll.u32 [#allocation2], 4
      %s25 = int_to_ptr.vmem [resolvable:$true] %s24
      %30 = dma.hbm_to_vmem [thread:$0]  %s0, 256, %s25, [#allocation3], 128, 128, 8
    $region5: #{tpu_custom_call.1} parent=1 // pred_fallthru
      _
    // Predicated region
    $region6: #{tpu_custom_call.1} parent=1 // pred_check
      _
    $region7: #{tpu_custom_call.1} parent=1 // pred_check_branch
      %32 = sbr.rel (0) target = $region9
    $region8: #{tpu_custom_call.1} parent=1 // pred_region
      %s34 = ssub.s32 256, 256
      %35 = vsyncadd [#allocation6], %s34
      %s36 = sshll.u32 [#allocation5], 4
      %s37 = int_to_ptr.vmem [resolvable:$true] %s36
      %42 = dma.hbm_to_vmem [thread:$0]  %s1, 256, %s37, [#allocation6], 128, 128, 8
    $region9: #{tpu_custom_call.1} parent=1 // pred_fallthru
      _
    // Predicated region
    $region10: #{tpu_custom_call.1} parent=1 // pred_check
      _
    $region11: #{tpu_custom_call.1} parent=1 // pred_check_branch
      %44 = sbr.rel (0) target = $region13
    $region12: #{tpu_custom_call.1} parent=1 // pred_region
      _
    $region13: #{tpu_custom_call.1} parent=1 // pred_fallthru
      _
    // Predicated region
    $region14: #{tpu_custom_call.1} parent=1 // pred_check
      _
    $region15: #{tpu_custom_call.1} parent=1 // pred_check_branch
      %46 = sbr.rel (0) target = $region17
    $region16: #{tpu_custom_call.1} parent=1 // pred_region
      _
    $region17: #{tpu_custom_call.1} parent=1 // pred_fallthru
      _
    // Predicated region
    $region18: #{tpu_custom_call.1} parent=1 // pred_check
      _
    $region19: #{tpu_custom_call.1} parent=1 // pred_check_branch
      %48 = sbr.rel (0) target = $region21
    $region20: #{tpu_custom_call.1} parent=1 // pred_region
      _
    $region21: #{tpu_custom_call.1} parent=1 // pred_fallthru
      _
    // Predicated region
    $region22: #{tpu_custom_call.1} parent=1 // pred_check
      _
    $region23: #{tpu_custom_call.1} parent=1 // pred_check_branch
      %50 = sbr.rel (0) target = $region25
    $region24: #{tpu_custom_call.1} parent=1 // pred_region
      %s52 = ssub.s32 256, 256
      %53 = vsyncadd [#allocation6], %s52
      %s54 = sshll.u32 [#allocation7], 4
      %s55 = int_to_ptr.vmem [resolvable:$true] %s54
      %60 = dma.hbm_to_vmem [thread:$0]  %s5, 256, %s55, [#allocation6], 128, 128, 8
    $region25: #{tpu_custom_call.1} parent=1 // pred_fallthru
      _
    // Predicated region
    $region26: #{tpu_custom_call.1} parent=1 // pred_check
      _
    $region27: #{tpu_custom_call.1} parent=1 // pred_check_branch
      %62 = sbr.rel (0) target = $region29
    $region28: #{tpu_custom_call.1} parent=1 // pred_region
      _
    $region29: #{tpu_custom_call.1} parent=1 // pred_fallthru
      _
    // Predicated region
    $region30: #{tpu_custom_call.1} parent=1 // pred_check
      _
    $region31: #{tpu_custom_call.1} parent=1 // pred_check_branch
      %64 = sbr.rel (0) target = $region33
    $region32: #{tpu_custom_call.1} parent=1 // pred_region
      _
    $region33: #{tpu_custom_call.1} parent=1 // pred_fallthru
      _
    // Predicated region
    $region34: #{tpu_custom_call.1} parent=1 // pred_check
      _
    $region35: #{tpu_custom_call.1} parent=1 // pred_check_branch
      %66 = sbr.rel (0) target = $region37
    $region36: #{tpu_custom_call.1} parent=1 // pred_region
      _
    $region37: #{tpu_custom_call.1} parent=1 // pred_fallthru
      _
    // Predicated region
    $region38: #{tpu_custom_call.1} parent=1 // pred_check
      _
    $region39: #{tpu_custom_call.1} parent=1 // pred_check_branch
      %68 = sbr.rel (0) target = $region41
    $region40: #{tpu_custom_call.1} parent=1 // pred_region
      %69 = dma.done [#allocation3], 256
    $region41: #{tpu_custom_call.1} parent=1 // pred_fallthru
      _
    // Predicated region
    $region42: #{tpu_custom_call.1} parent=1 // pred_check
      _
    $region43: #{tpu_custom_call.1} parent=1 // pred_check_branch
      %71 = sbr.rel (0) target = $region45
    $region44: #{tpu_custom_call.1} parent=1 // pred_region
      %72 = dma.done [#allocation6], 256
    $region45: #{tpu_custom_call.1} parent=1 // pred_fallthru
      _
    // Predicated region
    $region46: #{tpu_custom_call.1} parent=1 // pred_check
      _
    $region47: #{tpu_custom_call.1} parent=1 // pred_check_branch
      %74 = sbr.rel (0) target = $region49
    $region48: #{tpu_custom_call.1} parent=1 // pred_region
      %75 = dma.done [#allocation6], 256
    $region49: #{tpu_custom_call.1} parent=1 // pred_fallthru
      _
    %v76 = vld [vmem:[#allocation2] sm:$0xff]
    %v77 = vld [vmem:[#allocation2 + $0x8] sm:$0xff]
    %v78 = vld [vmem:[#allocation5] sm:$0xff]
    %v79 = vld [vmem:[#allocation5 + $0x8] sm:$0xff]
    %v80 = vld [vmem:[%s2] sm:$0xff]
    %v81 = vld [vmem:[%s2 + $0x8] sm:$0xff]
    %v82 = vld [vmem:[%s2 + $0x10] sm:$0xff]
    %v83 = vld [vmem:[%s2 + $0x18] sm:$0xff]
    %vm84 = vcmask 261120
    %v86 = vsel %vm84, %v76, 0
    %v89 = vsel %vm84, %v77, 0
    %91 = vmatprep.subr.mxu0 0.0
    %92 = vmatpush1.msra.mxu0 0.0
    %93 = vmatprep.subr.mxu0 0.0
    %94 = vmatpush1.msra.mxu0 0.0
    %95 = vmatprep.subr.mxu0 0.0
    %96 = vmatpush1.msra.mxu0 0.0
    %97 = vmatprep.subr.mxu0 0.0
    %98 = vmatpush1.msra.mxu0 0.0
    %99 = vmatprep.subr.mxu0 0.0
    %100 = vmatpush1.msra.mxu0 0.0
    %101 = vmatprep.subr.mxu0 0.0
    %102 = vmatpush1.msra.mxu0 0.0
    %103 = vmatprep.subr.mxu0 0.0
    %104 = vmatpush1.msra.mxu0 0.0
    %105 = vmatprep.subr.mxu0 0.0
    %106 = vmatpush1.msra.mxu0 0.0
    %107 = vmatprep.subr.mxu0 0.0
    %108 = vmatpush1.msra.mxu0 0.0
    %109 = vmatprep.subr.mxu0 0.0
    %110 = vmatpush1.msra.mxu0 0.0
    %111 = vmatprep.subr.mxu0 0.0
    %112 = vmatpush1.msra.mxu0 0.0
    %113 = vmatprep.subr.mxu0 0.0
    %114 = vmatpush1.msra.mxu0 0.0
    %115 = vmatprep.subr.mxu0 0.0
    %116 = vmatpush1.msra.mxu0 %v83
    %117 = vmatprep.subr.mxu0 0.0
    %118 = vmatpush1.msra.mxu0 %v82
    %119 = vmatprep.subr.mxu0 0.0
    %120 = vmatpush1.msra.mxu0 %v81
    %121 = vmatprep.subr.mxu0 0.0
    %122 = vmatpush1.msra.mxu0 %v80
    %123 = vmatprep.subr.mxu0 0.0
    %124 = vmatpush2.msra.mxu0 0.0
    %125 = vmatprep.subr.mxu0 0.0
    %126 = vmatpush2.msra.mxu0 0.0
    %127 = vmatprep.subr.mxu0 0.0
    %128 = vmatpush2.msra.mxu0 0.0
    %129 = vmatprep.subr.mxu0 0.0
    %130 = vmatpush2.msra.mxu0 0.0
    %131 = vmatprep.subr.mxu0 0.0
    %132 = vmatpush2.msra.mxu0 0.0
    %133 = vmatprep.subr.mxu0 0.0
    %134 = vmatpush2.msra.mxu0 0.0
    %135 = vmatprep.subr.mxu0 0.0
    %136 = vmatpush2.msra.mxu0 0.0
    %137 = vmatprep.subr.mxu0 0.0
    %138 = vmatpush2.msra.mxu0 0.0
    %139 = vmatprep.subr.mxu0 0.0
    %140 = vmatpush2.msra.mxu0 0.0
    %141 = vmatprep.subr.mxu0 0.0
    %142 = vmatpush2.msra.mxu0 0.0
    %143 = vmatprep.subr.mxu0 0.0
    %144 = vmatpush2.msra.mxu0 0.0
    %145 = vmatprep.subr.mxu0 0.0
    %146 = vmatpush2.msra.mxu0 0.0
    %147 = vmatprep.subr.mxu0 0.0
    %148 = vmatpush2.msra.mxu0 0.0
    %149 = vmatprep.subr.mxu0 0.0
    %150 = vmatpush2.msra.mxu0 0.0
    %151 = vmatprep.subr.mxu0 0.0
    %152 = vmatpush2.msra.mxu0 0.0
    %153 = vmatprep.subr.mxu0 0.0
    %154 = vmatpush2.msra.mxu0 0.0
    %155 = vmatprep.mubr.f32.mxu0 0.0
    %156 = vmatmul.mubr.f32.gmra.mxu0 %v86
    %v157 = vpop.f32.mrf.mxu0
    %v158 = vadd.f32 0.0, %v157
    %v159 = vpop.f32.mrf.mxu0
    %160 = vmatprep.mubr.f32.mxu0 0.0
    %161 = vmatmul.mubr.f32.gmra.mxu0 %v89
    %v162 = vpop.f32.mrf.mxu0
    %v163 = vadd.f32 0.0, %v162
    %v164 = vpop.f32.mrf.mxu0
    %165 = vdwg.mxu0
    %v166 = vtanh.pop %v158
    %v167 = vtanh.pop %v163
    %vm168 = vcmask 130048
    %v170 = vsel %vm168, %v78, 0
    %v173 = vsel %vm168, %v79, 0
    %175 = vmatprep.subr.mxu0 0.0
    %176 = vmatpush1.msra.mxu0 0.0
    %177 = vmatprep.subr.mxu0 0.0
    %178 = vmatpush1.msra.mxu0 0.0
    %179 = vmatprep.subr.mxu0 0.0
    %180 = vmatpush1.msra.mxu0 0.0
    %181 = vmatprep.subr.mxu0 0.0
    %182 = vmatpush1.msra.mxu0 0.0
    %183 = vmatprep.subr.mxu0 0.0
    %184 = vmatpush1.msra.mxu0 0.0
    %185 = vmatprep.subr.mxu0 0.0
    %186 = vmatpush1.msra.mxu0 0.0
    %187 = vmatprep.subr.mxu0 0.0
    %188 = vmatpush1.msra.mxu0 0.0
    %189 = vmatprep.subr.mxu0 0.0
    %190 = vmatpush1.msra.mxu0 0.0
    %191 = vmatprep.subr.mxu0 0.0
    %192 = vmatpush1.msra.mxu0 0.0
    %193 = vmatprep.subr.mxu0 0.0
    %194 = vmatpush1.msra.mxu0 0.0
    %195 = vmatprep.subr.mxu0 0.0
    %196 = vmatpush1.msra.mxu0 0.0
    %197 = vmatprep.subr.mxu0 0.0
    %198 = vmatpush1.msra.mxu0 0.0
    %199 = vmatprep.subr.mxu0 0.0
    %200 = vmatpush1.msra.mxu0 0.0
    %201 = vmatprep.subr.mxu0 0.0
    %202 = vmatpush1.msra.mxu0 0.0
    %203 = vmatprep.subr.mxu0 0.0
    %204 = vmatpush1.msra.mxu0 %v167
    %205 = vmatprep.subr.mxu0 0.0
    %206 = vmatpush1.msra.mxu0 %v166
    %207 = vmatprep.subr.mxu0 0.0
    %208 = vmatpush2.msra.mxu0 0.0
    %209 = vmatprep.subr.mxu0 0.0
    %210 = vmatpush2.msra.mxu0 0.0
    %211 = vmatprep.subr.mxu0 0.0
    %212 = vmatpush2.msra.mxu0 0.0
    %213 = vmatprep.subr.mxu0 0.0
    %214 = vmatpush2.msra.mxu0 0.0
    %215 = vmatprep.subr.mxu0 0.0
    %216 = vmatpush2.msra.mxu0 0.0
    %217 = vmatprep.subr.mxu0 0.0
    %218 = vmatpush2.msra.mxu0 0.0
    %219 = vmatprep.subr.mxu0 0.0
    %220 = vmatpush2.msra.mxu0 0.0
    %221 = vmatprep.subr.mxu0 0.0
    %222 = vmatpush2.msra.mxu0 0.0
    %223 = vmatprep.subr.mxu0 0.0
    %224 = vmatpush2.msra.mxu0 0.0
    %225 = vmatprep.subr.mxu0 0.0
    %226 = vmatpush2.msra.mxu0 0.0
    %227 = vmatprep.subr.mxu0 0.0
    %228 = vmatpush2.msra.mxu0 0.0
    %229 = vmatprep.subr.mxu0 0.0
    %230 = vmatpush2.msra.mxu0 0.0
    %231 = vmatprep.subr.mxu0 0.0
    %232 = vmatpush2.msra.mxu0 0.0
    %233 = vmatprep.subr.mxu0 0.0
    %234 = vmatpush2.msra.mxu0 0.0
    %235 = vmatprep.subr.mxu0 0.0
    %236 = vmatpush2.msra.mxu0 0.0
    %237 = vmatprep.subr.mxu0 0.0
    %238 = vmatpush2.msra.mxu0 0.0
    %239 = vmatprep.mubr.f32.mxu0 0.0
    %240 = vmatmul.mubr.f32.gmra.mxu0 %v170
    %v241 = vpop.f32.mrf.mxu0
    %v242 = vadd.f32 0.0, %v241
    %v243 = vpop.f32.mrf.mxu0
    %244 = vmatprep.mubr.f32.mxu0 0.0
    %245 = vmatmul.mubr.f32.gmra.mxu0 %v173
    %v246 = vpop.f32.mrf.mxu0
    %v247 = vadd.f32 0.0, %v246
    %v248 = vpop.f32.mrf.mxu0
    %249 = vdwg.mxu0
    %v250 = vld [vmem:[%s3] sm:$0xff]
    %v251 = vld [vmem:[%s3 + $0x8] sm:$0xff]
    %v252 = vld [vmem:[%s3 + $0x10] sm:$0xff]
    %v253 = vld [vmem:[%s3 + $0x18] sm:$0xff]
    %v255 = vsel %vm84, %v242, 0
    %v258 = vsel %vm84, %v247, 0
    %260 = vmatprep.subr.mxu0 0.0
    %261 = vmatpush1.msra.mxu0 0.0
    %262 = vmatprep.subr.mxu0 0.0
    %263 = vmatpush1.msra.mxu0 0.0
    %264 = vmatprep.subr.mxu0 0.0
    %265 = vmatpush1.msra.mxu0 0.0
    %266 = vmatprep.subr.mxu0 0.0
    %267 = vmatpush1.msra.mxu0 0.0
    %268 = vmatprep.subr.mxu0 0.0
    %269 = vmatpush1.msra.mxu0 0.0
    %270 = vmatprep.subr.mxu0 0.0
    %271 = vmatpush1.msra.mxu0 0.0
    %272 = vmatprep.subr.mxu0 0.0
    %273 = vmatpush1.msra.mxu0 0.0
    %274 = vmatprep.subr.mxu0 0.0
    %275 = vmatpush1.msra.mxu0 0.0
    %276 = vmatprep.subr.mxu0 0.0
    %277 = vmatpush1.msra.mxu0 0.0
    %278 = vmatprep.subr.mxu0 0.0
    %279 = vmatpush1.msra.mxu0 0.0
    %280 = vmatprep.subr.mxu0 0.0
    %281 = vmatpush1.msra.mxu0 0.0
    %282 = vmatprep.subr.mxu0 0.0
    %283 = vmatpush1.msra.mxu0 0.0
    %284 = vmatprep.subr.mxu0 0.0
    %285 = vmatpush1.msra.mxu0 %v253
    %286 = vmatprep.subr.mxu0 0.0
    %287 = vmatpush1.msra.mxu0 %v252
    %288 = vmatprep.subr.mxu0 0.0
    %289 = vmatpush1.msra.mxu0 %v251
    %290 = vmatprep.subr.mxu0 0.0
    %291 = vmatpush1.msra.mxu0 %v250
    %292 = vmatprep.subr.mxu0 0.0
    %293 = vmatpush2.msra.mxu0 0.0
    %294 = vmatprep.subr.mxu0 0.0
    %295 = vmatpush2.msra.mxu0 0.0
    %296 = vmatprep.subr.mxu0 0.0
    %297 = vmatpush2.msra.mxu0 0.0
    %298 = vmatprep.subr.mxu0 0.0
    %299 = vmatpush2.msra.mxu0 0.0
    %300 = vmatprep.subr.mxu0 0.0
    %301 = vmatpush2.msra.mxu0 0.0
    %302 = vmatprep.subr.mxu0 0.0
    %303 = vmatpush2.msra.mxu0 0.0
    %304 = vmatprep.subr.mxu0 0.0
    %305 = vmatpush2.msra.mxu0 0.0
    %306 = vmatprep.subr.mxu0 0.0
    %307 = vmatpush2.msra.mxu0 0.0
    %308 = vmatprep.subr.mxu0 0.0
    %309 = vmatpush2.msra.mxu0 0.0
    %310 = vmatprep.subr.mxu0 0.0
    %311 = vmatpush2.msra.mxu0 0.0
    %312 = vmatprep.subr.mxu0 0.0
    %313 = vmatpush2.msra.mxu0 0.0
    %314 = vmatprep.subr.mxu0 0.0
    %315 = vmatpush2.msra.mxu0 0.0
    %316 = vmatprep.subr.mxu0 0.0
    %317 = vmatpush2.msra.mxu0 0.0
    %318 = vmatprep.subr.mxu0 0.0
    %319 = vmatpush2.msra.mxu0 0.0
    %320 = vmatprep.subr.mxu0 0.0
    %321 = vmatpush2.msra.mxu0 0.0
    %322 = vmatprep.subr.mxu0 0.0
    %323 = vmatpush2.msra.mxu0 0.0
    %324 = vmatprep.mubr.f32.mxu0 0.0
    %325 = vmatmul.mubr.f32.gmra.mxu0 %v255
    %v326 = vpop.f32.mrf.mxu0
    %v327 = vadd.f32 0.0, %v326
    %v328 = vpop.f32.mrf.mxu0
    %329 = vmatprep.mubr.f32.mxu0 0.0
    %330 = vmatmul.mubr.f32.gmra.mxu0 %v258
    %v331 = vpop.f32.mrf.mxu0
    %v332 = vadd.f32 0.0, %v331
    %v333 = vpop.f32.mrf.mxu0
    %334 = vdwg.mxu0
    %v335 = vtanh.pop %v327
    %v336 = vtanh.pop %v332
    %337 = vmatprep.subr.mxu0 0.0
    %338 = vmatpush1.msra.mxu0 0.0
    %339 = vmatprep.subr.mxu0 0.0
    %340 = vmatpush1.msra.mxu0 0.0
    %341 = vmatprep.subr.mxu0 0.0
    %342 = vmatpush1.msra.mxu0 0.0
    %343 = vmatprep.subr.mxu0 0.0
    %344 = vmatpush1.msra.mxu0 0.0
    %345 = vmatprep.subr.mxu0 0.0
    %346 = vmatpush1.msra.mxu0 0.0
    %347 = vmatprep.subr.mxu0 0.0
    %348 = vmatpush1.msra.mxu0 0.0
    %349 = vmatprep.subr.mxu0 0.0
    %350 = vmatpush1.msra.mxu0 0.0
    %351 = vmatprep.subr.mxu0 0.0
    %352 = vmatpush1.msra.mxu0 0.0
    %353 = vmatprep.subr.mxu0 0.0
    %354 = vmatpush1.msra.mxu0 0.0
    %355 = vmatprep.subr.mxu0 0.0
    %356 = vmatpush1.msra.mxu0 0.0
    %357 = vmatprep.subr.mxu0 0.0
    %358 = vmatpush1.msra.mxu0 0.0
    %359 = vmatprep.subr.mxu0 0.0
    %360 = vmatpush1.msra.mxu0 0.0
    %361 = vmatprep.subr.mxu0 0.0
    %362 = vmatpush1.msra.mxu0 0.0
    %363 = vmatprep.subr.mxu0 0.0
    %364 = vmatpush1.msra.mxu0 0.0
    %365 = vmatprep.subr.mxu0 0.0
    %366 = vmatpush1.msra.mxu0 %v336
    %367 = vmatprep.subr.mxu0 0.0
    %368 = vmatpush1.msra.mxu0 %v335
    %369 = vmatprep.subr.mxu0 0.0
    %370 = vmatpush2.msra.mxu0 0.0
    %371 = vmatprep.subr.mxu0 0.0
    %372 = vmatpush2.msra.mxu0 0.0
    %373 = vmatprep.subr.mxu0 0.0
    %374 = vmatpush2.msra.mxu0 0.0
    %375 = vmatprep.subr.mxu0 0.0
    %376 = vmatpush2.msra.mxu0 0.0
    %377 = vmatprep.subr.mxu0 0.0
    %378 = vmatpush2.msra.mxu0 0.0
    %379 = vmatprep.subr.mxu0 0.0
    %380 = vmatpush2.msra.mxu0 0.0
    %381 = vmatprep.subr.mxu0 0.0
    %382 = vmatpush2.msra.mxu0 0.0
    %383 = vmatprep.subr.mxu0 0.0
    %384 = vmatpush2.msra.mxu0 0.0
    %385 = vmatprep.subr.mxu0 0.0
    %386 = vmatpush2.msra.mxu0 0.0
    %387 = vmatprep.subr.mxu0 0.0
    %388 = vmatpush2.msra.mxu0 0.0
    %389 = vmatprep.subr.mxu0 0.0
    %390 = vmatpush2.msra.mxu0 0.0
    %391 = vmatprep.subr.mxu0 0.0
    %392 = vmatpush2.msra.mxu0 0.0
    %393 = vmatprep.subr.mxu0 0.0
    %394 = vmatpush2.msra.mxu0 0.0
    %395 = vmatprep.subr.mxu0 0.0
    %396 = vmatpush2.msra.mxu0 0.0
    %397 = vmatprep.subr.mxu0 0.0
    %398 = vmatpush2.msra.mxu0 0.0
    %399 = vmatprep.subr.mxu0 0.0
    %400 = vmatpush2.msra.mxu0 0.0
    %401 = vmatprep.mubr.f32.mxu0 0.0
    %402 = vmatmul.mubr.f32.gmra.mxu0 %v170
    %v403 = vpop.f32.mrf.mxu0
    %v404 = vadd.f32 0.0, %v403
    %v405 = vpop.f32.mrf.mxu0
    %406 = vmatprep.mubr.f32.mxu0 0.0
    %407 = vmatmul.mubr.f32.gmra.mxu0 %v173
    %v408 = vpop.f32.mrf.mxu0
    %v409 = vadd.f32 0.0, %v408
    %v410 = vpop.f32.mrf.mxu0
    %411 = vdwg.mxu0
    %v412 = vld [vmem:[%s4] sm:$0xff]
    %v413 = vld [vmem:[%s4 + $0x8] sm:$0xff]
    %v414 = vld [vmem:[%s4 + $0x10] sm:$0xff]
    %v415 = vld [vmem:[%s4 + $0x18] sm:$0xff]
    %v417 = vsel %vm84, %v404, 0
    %v420 = vsel %vm84, %v409, 0
    %422 = vmatprep.subr.mxu0 0.0
    %423 = vmatpush1.msra.mxu0 0.0
    %424 = vmatprep.subr.mxu0 0.0
    %425 = vmatpush1.msra.mxu0 0.0
    %426 = vmatprep.subr.mxu0 0.0
    %427 = vmatpush1.msra.mxu0 0.0
    %428 = vmatprep.subr.mxu0 0.0
    %429 = vmatpush1.msra.mxu0 0.0
    %430 = vmatprep.subr.mxu0 0.0
    %431 = vmatpush1.msra.mxu0 0.0
    %432 = vmatprep.subr.mxu0 0.0
    %433 = vmatpush1.msra.mxu0 0.0
    %434 = vmatprep.subr.mxu0 0.0
    %435 = vmatpush1.msra.mxu0 0.0
    %436 = vmatprep.subr.mxu0 0.0
    %437 = vmatpush1.msra.mxu0 0.0
    %438 = vmatprep.subr.mxu0 0.0
    %439 = vmatpush1.msra.mxu0 0.0
    %440 = vmatprep.subr.mxu0 0.0
    %441 = vmatpush1.msra.mxu0 0.0
    %442 = vmatprep.subr.mxu0 0.0
    %443 = vmatpush1.msra.mxu0 0.0
    %444 = vmatprep.subr.mxu0 0.0
    %445 = vmatpush1.msra.mxu0 0.0
    %446 = vmatprep.subr.mxu0 0.0
    %447 = vmatpush1.msra.mxu0 %v415
    %448 = vmatprep.subr.mxu0 0.0
    %449 = vmatpush1.msra.mxu0 %v414
    %450 = vmatprep.subr.mxu0 0.0
    %451 = vmatpush1.msra.mxu0 %v413
    %452 = vmatprep.subr.mxu0 0.0
    %453 = vmatpush1.msra.mxu0 %v412
    %454 = vmatprep.subr.mxu0 0.0
    %455 = vmatpush2.msra.mxu0 0.0
    %456 = vmatprep.subr.mxu0 0.0
    %457 = vmatpush2.msra.mxu0 0.0
    %458 = vmatprep.subr.mxu0 0.0
    %459 = vmatpush2.msra.mxu0 0.0
    %460 = vmatprep.subr.mxu0 0.0
    %461 = vmatpush2.msra.mxu0 0.0
    %462 = vmatprep.subr.mxu0 0.0
    %463 = vmatpush2.msra.mxu0 0.0
    %464 = vmatprep.subr.mxu0 0.0
    %465 = vmatpush2.msra.mxu0 0.0
    %466 = vmatprep.subr.mxu0 0.0
    %467 = vmatpush2.msra.mxu0 0.0
    %468 = vmatprep.subr.mxu0 0.0
    %469 = vmatpush2.msra.mxu0 0.0
    %470 = vmatprep.subr.mxu0 0.0
    %471 = vmatpush2.msra.mxu0 0.0
    %472 = vmatprep.subr.mxu0 0.0
    %473 = vmatpush2.msra.mxu0 0.0
    %474 = vmatprep.subr.mxu0 0.0
    %475 = vmatpush2.msra.mxu0 0.0
    %476 = vmatprep.subr.mxu0 0.0
    %477 = vmatpush2.msra.mxu0 0.0
    %478 = vmatprep.subr.mxu0 0.0
    %479 = vmatpush2.msra.mxu0 0.0
    %480 = vmatprep.subr.mxu0 0.0
    %481 = vmatpush2.msra.mxu0 0.0
    %482 = vmatprep.subr.mxu0 0.0
    %483 = vmatpush2.msra.mxu0 0.0
    %484 = vmatprep.subr.mxu0 0.0
    %485 = vmatpush2.msra.mxu0 0.0
    %486 = vmatprep.mubr.f32.mxu0 0.0
    %487 = vmatmul.mubr.f32.gmra.mxu0 %v417
    %v488 = vpop.f32.mrf.mxu0
    %v489 = vadd.f32 0.0, %v488
    %v490 = vpop.f32.mrf.mxu0
    %491 = vmatprep.mubr.f32.mxu0 0.0
    %492 = vmatmul.mubr.f32.gmra.mxu0 %v420
    %v493 = vpop.f32.mrf.mxu0
    %v494 = vadd.f32 0.0, %v493
    %v495 = vpop.f32.mrf.mxu0
    %496 = vdwg.mxu0
    %497 = vmatprep.subr.mxu0 0.0
    %498 = vmatpush1.msra.mxu0 0.0
    %499 = vmatprep.subr.mxu0 0.0
    %500 = vmatpush1.msra.mxu0 0.0
    %501 = vmatprep.subr.mxu0 0.0
    %502 = vmatpush1.msra.mxu0 0.0
    %503 = vmatprep.subr.mxu0 0.0
    %504 = vmatpush1.msra.mxu0 0.0
    %505 = vmatprep.subr.mxu0 0.0
    %506 = vmatpush1.msra.mxu0 0.0
    %507 = vmatprep.subr.mxu0 0.0
    %508 = vmatpush1.msra.mxu0 0.0
    %509 = vmatprep.subr.mxu0 0.0
    %510 = vmatpush1.msra.mxu0 0.0
    %511 = vmatprep.subr.mxu0 0.0
    %512 = vmatpush1.msra.mxu0 0.0
    %513 = vmatprep.subr.mxu0 0.0
    %514 = vmatpush1.msra.mxu0 0.0
    %515 = vmatprep.subr.mxu0 0.0
    %516 = vmatpush1.msra.mxu0 0.0
    %517 = vmatprep.subr.mxu0 0.0
    %518 = vmatpush1.msra.mxu0 0.0
    %519 = vmatprep.subr.mxu0 0.0
    %520 = vmatpush1.msra.mxu0 0.0
    %521 = vmatprep.subr.mxu0 0.0
    %522 = vmatpush1.msra.mxu0 0.0
    %523 = vmatprep.subr.mxu0 0.0
    %524 = vmatpush1.msra.mxu0 0.0
    %525 = vmatprep.subr.mxu0 0.0
    %526 = vmatpush1.msra.mxu0 %v494
    %527 = vmatprep.subr.mxu0 0.0
    %528 = vmatpush1.msra.mxu0 %v489
    %529 = vmatprep.subr.mxu0 0.0
    %530 = vmatpush2.msra.mxu0 0.0
    %531 = vmatprep.subr.mxu0 0.0
    %532 = vmatpush2.msra.mxu0 0.0
    %533 = vmatprep.subr.mxu0 0.0
    %534 = vmatpush2.msra.mxu0 0.0
    %535 = vmatprep.subr.mxu0 0.0
    %536 = vmatpush2.msra.mxu0 0.0
    %537 = vmatprep.subr.mxu0 0.0
    %538 = vmatpush2.msra.mxu0 0.0
    %539 = vmatprep.subr.mxu0 0.0
    %540 = vmatpush2.msra.mxu0 0.0
    %541 = vmatprep.subr.mxu0 0.0
    %542 = vmatpush2.msra.mxu0 0.0
    %543 = vmatprep.subr.mxu0 0.0
    %544 = vmatpush2.msra.mxu0 0.0
    %545 = vmatprep.subr.mxu0 0.0
    %546 = vmatpush2.msra.mxu0 0.0
    %547 = vmatprep.subr.mxu0 0.0
    %548 = vmatpush2.msra.mxu0 0.0
    %549 = vmatprep.subr.mxu0 0.0
    %550 = vmatpush2.msra.mxu0 0.0
    %551 = vmatprep.subr.mxu0 0.0
    %552 = vmatpush2.msra.mxu0 0.0
    %553 = vmatprep.subr.mxu0 0.0
    %554 = vmatpush2.msra.mxu0 0.0
    %555 = vmatprep.subr.mxu0 0.0
    %556 = vmatpush2.msra.mxu0 0.0
    %557 = vmatprep.subr.mxu0 0.0
    %558 = vmatpush2.msra.mxu0 0.0
    %559 = vmatprep.subr.mxu0 0.0
    %560 = vmatpush2.msra.mxu0 0.0
    %561 = vmatprep.mubr.f32.mxu0 0.0
    %562 = vmatmul.mubr.f32.gmra.mxu0 %v170
    %v563 = vpop.f32.mrf.mxu0
    %v564 = vadd.f32 0.0, %v563
    %v565 = vpop.f32.mrf.mxu0
    %566 = vmatprep.mubr.f32.mxu0 0.0
    %567 = vmatmul.mubr.f32.gmra.mxu0 %v173
    %v568 = vpop.f32.mrf.mxu0
    %v569 = vadd.f32 0.0, %v568
    %v570 = vpop.f32.mrf.mxu0
    %571 = vdwg.mxu0
    %572 = vst.msk [vmem:[#allocation8] sm:$0xff] %vm168, %v564
    %573 = vst.msk [vmem:[#allocation8 + $0x8] sm:$0xff] %vm168, %v569
    %v574 = vld [vmem:[#allocation7] sm:$0xff]
    %v575 = vld [vmem:[#allocation7 + $0x8] sm:$0xff]
    %v576 = vld [vmem:[%s6] sm:$0x1]
    %v578 = vlaneseq
    %v579 = vshrl.u32 %v578, 7
    %v580 = vsub.s32 0, %v579
    %v581 = vrot.slane %v576, %v580
    %v584 = vsel %vm168, %v564, 0
    %v587 = vsel %vm168, %v569, 0
    %589 = vmatprep.subr.mxu0 0.0
    %590 = vmatpush1.msra.mxu0 0.0
    %591 = vmatprep.subr.mxu0 0.0
    %592 = vmatpush1.msra.mxu0 0.0
    %593 = vmatprep.subr.mxu0 0.0
    %594 = vmatpush1.msra.mxu0 0.0
    %595 = vmatprep.subr.mxu0 0.0
    %596 = vmatpush1.msra.mxu0 0.0
    %597 = vmatprep.subr.mxu0 0.0
    %598 = vmatpush1.msra.mxu0 0.0
    %599 = vmatprep.subr.mxu0 0.0
    %600 = vmatpush1.msra.mxu0 0.0
    %601 = vmatprep.subr.mxu0 0.0
    %602 = vmatpush1.msra.mxu0 0.0
    %603 = vmatprep.subr.mxu0 0.0
    %604 = vmatpush1.msra.mxu0 0.0
    %605 = vmatprep.subr.mxu0 0.0
    %606 = vmatpush1.msra.mxu0 0.0
    %607 = vmatprep.subr.mxu0 0.0
    %608 = vmatpush1.msra.mxu0 0.0
    %609 = vmatprep.subr.mxu0 0.0
    %610 = vmatpush1.msra.mxu0 0.0
    %611 = vmatprep.subr.mxu0 0.0
    %612 = vmatpush1.msra.mxu0 0.0
    %613 = vmatprep.subr.mxu0 0.0
    %614 = vmatpush1.msra.mxu0 0.0
    %615 = vmatprep.subr.mxu0 0.0
    %616 = vmatpush1.msra.mxu0 0.0
    %617 = vmatprep.subr.mxu0 0.0
    %618 = vmatpush1.msra.mxu0 %v575
    %619 = vmatprep.subr.mxu0 0.0
    %620 = vmatpush1.msra.mxu0 %v574
    %621 = vmatprep.subr.mxu0 0.0
    %622 = vmatpush2.msra.mxu0 0.0
    %623 = vmatprep.subr.mxu0 0.0
    %624 = vmatpush2.msra.mxu0 0.0
    %625 = vmatprep.subr.mxu0 0.0
    %626 = vmatpush2.msra.mxu0 0.0
    %627 = vmatprep.subr.mxu0 0.0
    %628 = vmatpush2.msra.mxu0 0.0
    %629 = vmatprep.subr.mxu0 0.0
    %630 = vmatpush2.msra.mxu0 0.0
    %631 = vmatprep.subr.mxu0 0.0
    %632 = vmatpush2.msra.mxu0 0.0
    %633 = vmatprep.subr.mxu0 0.0
    %634 = vmatpush2.msra.mxu0 0.0
    %635 = vmatprep.subr.mxu0 0.0
    %636 = vmatpush2.msra.mxu0 0.0
    %637 = vmatprep.subr.mxu0 0.0
    %638 = vmatpush2.msra.mxu0 0.0
    %639 = vmatprep.subr.mxu0 0.0
    %640 = vmatpush2.msra.mxu0 0.0
    %641 = vmatprep.subr.mxu0 0.0
    %642 = vmatpush2.msra.mxu0 0.0
    %643 = vmatprep.subr.mxu0 0.0
    %644 = vmatpush2.msra.mxu0 0.0
    %645 = vmatprep.subr.mxu0 0.0
    %646 = vmatpush2.msra.mxu0 0.0
    %647 = vmatprep.subr.mxu0 0.0
    %648 = vmatpush2.msra.mxu0 0.0
    %649 = vmatprep.subr.mxu0 0.0
    %650 = vmatpush2.msra.mxu0 0.0
    %651 = vmatprep.subr.mxu0 0.0
    %652 = vmatpush2.msra.mxu0 0.0
    %653 = vmatprep.mubr.f32.mxu0 0.0
    %654 = vmatmul.mubr.f32.gmra.mxu0 %v584
    %v655 = vpop.f32.mrf.mxu0
    %v656 = vadd.f32 %v581, %v655
    %v657 = vpop.f32.mrf.mxu0
    %658 = vmatprep.mubr.f32.mxu0 0.0
    %659 = vmatmul.mubr.f32.gmra.mxu0 %v587
    %v660 = vpop.f32.mrf.mxu0
    %v661 = vadd.f32 %v581, %v660
    %v662 = vpop.f32.mrf.mxu0
    %663 = vdwg.mxu0
    %v664 = vmax.f32 %v656, 0.0
    %v665 = vmax.f32 %v661, 0.0
    %v666 = vld [vmem:[%s7] sm:$0xff]
    %v667 = vld [vmem:[%s7 + $0x8] sm:$0xff]
    %v668 = vld [vmem:[%s8] sm:$0x1]
    %v670 = vlaneseq
    %v671 = vshrl.u32 %v670, 7
    %v672 = vsub.s32 0, %v671
    %v673 = vrot.slane %v668, %v672
    %v676 = vsel %vm168, %v664, 0
    %v679 = vsel %vm168, %v665, 0
    %681 = vmatprep.subr.mxu0 0.0
    %682 = vmatpush1.msra.mxu0 0.0
    %683 = vmatprep.subr.mxu0 0.0
    %684 = vmatpush1.msra.mxu0 0.0
    %685 = vmatprep.subr.mxu0 0.0
    %686 = vmatpush1.msra.mxu0 0.0
    %687 = vmatprep.subr.mxu0 0.0
    %688 = vmatpush1.msra.mxu0 0.0
    %689 = vmatprep.subr.mxu0 0.0
    %690 = vmatpush1.msra.mxu0 0.0
    %691 = vmatprep.subr.mxu0 0.0
    %692 = vmatpush1.msra.mxu0 0.0
    %693 = vmatprep.subr.mxu0 0.0
    %694 = vmatpush1.msra.mxu0 0.0
    %695 = vmatprep.subr.mxu0 0.0
    %696 = vmatpush1.msra.mxu0 0.0
    %697 = vmatprep.subr.mxu0 0.0
    %698 = vmatpush1.msra.mxu0 0.0
    %699 = vmatprep.subr.mxu0 0.0
    %700 = vmatpush1.msra.mxu0 0.0
    %701 = vmatprep.subr.mxu0 0.0
    %702 = vmatpush1.msra.mxu0 0.0
    %703 = vmatprep.subr.mxu0 0.0
    %704 = vmatpush1.msra.mxu0 0.0
    %705 = vmatprep.subr.mxu0 0.0
    %706 = vmatpush1.msra.mxu0 0.0
    %707 = vmatprep.subr.mxu0 0.0
    %708 = vmatpush1.msra.mxu0 0.0
    %709 = vmatprep.subr.mxu0 0.0
    %710 = vmatpush1.msra.mxu0 %v667
    %711 = vmatprep.subr.mxu0 0.0
    %712 = vmatpush1.msra.mxu0 %v666
    %713 = vmatprep.subr.mxu0 0.0
    %714 = vmatpush2.msra.mxu0 0.0
    %715 = vmatprep.subr.mxu0 0.0
    %716 = vmatpush2.msra.mxu0 0.0
    %717 = vmatprep.subr.mxu0 0.0
    %718 = vmatpush2.msra.mxu0 0.0
    %719 = vmatprep.subr.mxu0 0.0
    %720 = vmatpush2.msra.mxu0 0.0
    %721 = vmatprep.subr.mxu0 0.0
    %722 = vmatpush2.msra.mxu0 0.0
    %723 = vmatprep.subr.mxu0 0.0
    %724 = vmatpush2.msra.mxu0 0.0
    %725 = vmatprep.subr.mxu0 0.0
    %726 = vmatpush2.msra.mxu0 0.0
    %727 = vmatprep.subr.mxu0 0.0
    %728 = vmatpush2.msra.mxu0 0.0
    %729 = vmatprep.subr.mxu0 0.0
    %730 = vmatpush2.msra.mxu0 0.0
    %731 = vmatprep.subr.mxu0 0.0
    %732 = vmatpush2.msra.mxu0 0.0
    %733 = vmatprep.subr.mxu0 0.0
    %734 = vmatpush2.msra.mxu0 0.0
    %735 = vmatprep.subr.mxu0 0.0
    %736 = vmatpush2.msra.mxu0 0.0
    %737 = vmatprep.subr.mxu0 0.0
    %738 = vmatpush2.msra.mxu0 0.0
    %739 = vmatprep.subr.mxu0 0.0
    %740 = vmatpush2.msra.mxu0 0.0
    %741 = vmatprep.subr.mxu0 0.0
    %742 = vmatpush2.msra.mxu0 0.0
    %743 = vmatprep.subr.mxu0 0.0
    %744 = vmatpush2.msra.mxu0 0.0
    %745 = vmatprep.mubr.f32.mxu0 0.0
    %746 = vmatmul.mubr.f32.gmra.mxu0 %v676
    %v747 = vpop.f32.mrf.mxu0
    %v748 = vadd.f32 %v673, %v747
    %v749 = vpop.f32.mrf.mxu0
    %750 = vmatprep.mubr.f32.mxu0 0.0
    %751 = vmatmul.mubr.f32.gmra.mxu0 %v679
    %v752 = vpop.f32.mrf.mxu0
    %v753 = vadd.f32 %v673, %v752
    %v754 = vpop.f32.mrf.mxu0
    %755 = vdwg.mxu0
    %vm756 = vcmask 31744
    %v757 = vsel %vm756, %v748, -inf
    %758 = vmax.xlane.f32.xlu0 %v757
    %v759 = vpop.xlane.xlu0 %758
    %v760 = vsel %vm756, %v753, -inf
    %761 = vmax.xlane.f32.xlu0 %v760
    %v762 = vpop.xlane.xlu0 %761
    %v763 = vsub.f32 %v748, %v759
    %v764 = vsub.f32 %v753, %v762
    %v765 = vmul.f32 %v763, 1.442695
    %v766 = vpow.pop %v765
    %v767 = vmul.f32 %v764, 1.442695
    %v768 = vpow.pop %v767
    %v769 = vsel %vm756, %v766, 0.0
    %770 = vadd.xlane.f32.xlu0 %v769
    %v771 = vpop.xlane.xlu0 %770
    %v772 = vsel %vm756, %v768, 0.0
    %773 = vadd.xlane.f32.xlu0 %v772
    %v774 = vpop.xlane.xlu0 %773
    %v775 = vrcp.pop %v771
    %v776 = vrcp.pop %v774
    %v777 = vmul.f32 %v766, %v775
    %v778 = vmul.f32 %v768, %v776
    %779 = vst.msk [vmem:[%s10] sm:$0xff] %vm756, %v777
    %780 = vst.msk [vmem:[%s10 + $0x8] sm:$0xff] %vm756, %v778
    // Predicated region
    $region50: #{tpu_custom_call.1} parent=1 // pred_check
      _
    $region51: #{tpu_custom_call.1} parent=1 // pred_check_branch
      %782 = sbr.rel (0) target = $region53
    $region52: #{tpu_custom_call.1} parent=1 // pred_region
      %s784 = ssub.s32 256, 256
      %785 = vsyncadd [#allocation4], %s784
      %s786 = sshll.u32 [#allocation8], 4
      %s787 = int_to_ptr.vmem [resolvable:$true] %s786
      %792 = dma.vmem_to_hbm [thread:$0]  %s787, 256, %s9, [#allocation4], 128, 128, 8
    $region53: #{tpu_custom_call.1} parent=1 // pred_fallthru
      _
    // Predicated region
    $region54: #{tpu_custom_call.1} parent=1 // pred_check
      _
    $region55: #{tpu_custom_call.1} parent=1 // pred_check_branch
      %794 = sbr.rel (0) target = $region57
    $region56: #{tpu_custom_call.1} parent=1 // pred_region
      _
    $region57: #{tpu_custom_call.1} parent=1 // pred_fallthru
      _
    // Predicated region
    $region58: #{tpu_custom_call.1} parent=1 // pred_check
      _
    $region59: #{tpu_custom_call.1} parent=1 // pred_check_branch
      %796 = sbr.rel (0) target = $region61
    $region60: #{tpu_custom_call.1} parent=1 // pred_region
      %797 = dma.done [#allocation4], 256
    $region61: #{tpu_custom_call.1} parent=1 // pred_fallthru
      _
    // Predicated region
    $region62: #{tpu_custom_call.1} parent=1 // pred_check
      _
    $region63: #{tpu_custom_call.1} parent=1 // pred_check_branch
      %799 = sbr.rel (0) target = $region65
    $region64: #{tpu_custom_call.1} parent=1 // pred_region
      _
    $region65: #{tpu_custom_call.1} parent=1 // pred_fallthru
      _
    %800 = vsyncpa [#allocation3], 1
    %801 = vsyncpa [#allocation6], 1
    %802 = vsyncpa [#allocation4], 1

</llo_original>
